<compile_context>
chip_gen: v5e
topology: v5e:2x2
jax: 0.10.0
libtpu: 0.0.40
codegen_flags: <defaults>
</compile_context>

<pallas_src>
import functools

import jax
import jax.numpy as jnp
from jax.experimental import pallas as pl
from jax.experimental.pallas import tpu as pltpu


def _round_up(n, m):
    return ((n + m - 1) // m) * m


def _sublane_rows(itemsize):
    # 8 rows for f32, 16 for bf16, 32 for int8 (sub-32-bit dtypes pack sublanes).
    return max(8, 32 // max(int(itemsize), 1))


def _vmem_budget():
    """(vmem_limit_bytes, tile_budget_bytes) sized for the current TPU generation."""
    phys = 64 * 1024 * 1024  # conservative fallback = v7x per-TC VMEM
    try:
        info = pltpu.get_tpu_info()
        cap = getattr(info, "vmem_capacity_bytes", None)
        if cap:
            phys = int(cap)
    except Exception:
        pass
    # Scoped-VMEM limit well under physical (v7x: 32 MiB of 64; v5e/v6e: 48 of 128).
    vmem_limit = min(max(phys // 2, 32 * 1024 * 1024), 48 * 1024 * 1024)
    # Budget for double-buffered in/out tiles + f32 intermediates, with headroom.
    tile_budget = min(vmem_limit - 8 * 1024 * 1024, 24 * 1024 * 1024)
    return vmem_limit, tile_budget


def _choose_tm(rows, dim, in_itemsize, out_itemsize, tile_budget):
    """Row-tile size: biggest that fits VMEM, <=512, biased toward a deep grid."""
    sub = _sublane_rows(in_itemsize)
    # Per-row VMEM bytes: double-buffered input + output tiles plus the two
    # (tm, dim) f32 intermediates the kernel materializes (upcast, product).
    per_row = 2 * dim * (in_itemsize + out_itemsize) + 2 * 4 * dim
    tm = tile_budget // max(per_row, 1)
    tm = max(sub, (tm // sub) * sub)
    tm = min(tm, 512)  # ~85% of HBM roofline already at 512-row tiles

    # Prefer >= 8 grid steps (>= 4 per TensorCore on v7x) when rows allow, but
    # keep each block >= ~128 KiB of input so the ~0.35us/step overhead stays
    # amortized.
    floor_rows = _round_up(pl.cdiv(128 * 1024, max(dim * in_itemsize, 1)), sub)
    deep = ((rows // 8) // sub) * sub
    if deep >= max(sub, floor_rows):
        tm = min(tm, deep)

    tm = min(tm, _round_up(rows, sub))
    return max(tm, sub)


def _rmsnorm_kernel(x_ref, scale_ref, o_ref, *, eps):
    # x_ref:     (TM, D) tile of rows (D = full last dim, lane-dense output)
    # scale_ref: (1,  D) broadcast scale, already f32
    x = x_ref[...].astype(jnp.float32)
    dim = x.shape[-1]

    # ||x||_2 along last axis; rows that are OOB in the ragged last block read
    # garbage but their stores are masked, so nothing escapes.
    sumsq = jnp.sum(x * x, axis=-1, keepdims=True)
    norm_x = jnp.sqrt(sumsq)
    rms_x = norm_x * jax.lax.rsqrt(jnp.float32(dim))

    denom = rms_x + jnp.float32(eps)
    inv = jnp.float32(1.0) / denom  # exact; only on the (TM, 1) column, ~free

    out = x * inv * scale_ref[...]
    o_ref[...] = out.astype(o_ref.dtype)


def rmsnorm(x, scale, eps=1e-5, block_rows=None):
    """x: (..., dim) array; scale: (dim,) array. Matches the PyTorch RMSNorm."""
    orig_shape = x.shape
    dim = int(orig_shape[-1])
    rows = 1
    for s in orig_shape[:-1]:
        rows *= int(s)

    # Empty input: nothing to normalize.
    if rows == 0 or dim == 0:
        return x

    x2d = x.reshape(rows, dim)
    scale2d = scale.astype(jnp.float32).reshape(1, dim)

    in_itemsize = jnp.dtype(x.dtype).itemsize
    vmem_limit, tile_budget = _vmem_budget()
    if block_rows is None:
        tm = _choose_tm(rows, dim, in_itemsize, in_itemsize, tile_budget)
    else:
        tm = _round_up(max(int(block_rows), 1), _sublane_rows(in_itemsize))

    grid = (pl.cdiv(rows, tm),)  # ragged last block handled by Pallas masking

    cost = pl.CostEstimate(
        flops=4 * rows * dim,
        transcendentals=2 * rows,
        bytes_accessed=rows * dim * 2 * in_itemsize + dim * 4,
    )

    kernel = functools.partial(_rmsnorm_kernel, eps=float(eps))

    out2d = pl.pallas_call(
        kernel,
        out_shape=jax.ShapeDtypeStruct((rows, dim), x.dtype),
        grid_spec=pltpu.PrefetchScalarGridSpec(
            num_scalar_prefetch=0,
            grid=grid,
            in_specs=[
                pl.BlockSpec((tm, dim), lambda i: (i, 0)),
                pl.BlockSpec((1, dim), lambda i: (0, 0)),
            ],
            out_specs=pl.BlockSpec((tm, dim), lambda i: (i, 0)),
        ),
        compiler_params=pltpu.CompilerParams(
            dimension_semantics=("parallel",),
            vmem_limit_bytes=vmem_limit,
        ),
        cost_estimate=cost,
    )(x2d, scale2d)

    return out2d.reshape(orig_shape)


def rmsnorm_ref(x, scale, eps=1e-5):
    """Pure-JAX reference matching the PyTorch forward."""
    d = x.shape[-1]
    xf = x.astype(jnp.float32)
    norm_x = jnp.sqrt(jnp.sum(xf * xf, axis=-1, keepdims=True))
    rms_x = norm_x * jax.lax.rsqrt(jnp.float32(d))
    x_normed = xf / (rms_x + eps)
    return (scale.astype(jnp.float32) * x_normed).astype(x.dtype)


if __name__ == "__main__":
    key = jax.random.PRNGKey(0)

    # Small shape consistent with the module (batch=2, seq=8, hidden=32).
    batch, seq, hidden = 2, 8, 32
    x = jax.random.normal(key, (batch, seq, hidden), dtype=jnp.float32)
    # Deterministic parameter init, matching nn.Parameter(torch.ones(dim)).
    scale = jnp.ones((hidden,), dtype=jnp.float32)

    out = rmsnorm(x, scale, eps=1e-5)
    out = jax.block_until_ready(out)
    ref = rmsnorm_ref(x, scale, eps=1e-5)
    assert out.shape == x.shape
    assert jnp.allclose(out, ref, atol=1e-4, rtol=1e-4), "mismatch vs reference (aligned case)"

    # Second check: non-aligned rows (3*5=15) and dim (200) exercise the
    # ragged-grid / non-128-multiple last-dim path with a non-trivial scale.
    key2, key3 = jax.random.split(jax.random.PRNGKey(1))
    x2 = jax.random.normal(key2, (3, 5, 200), dtype=jnp.float32)
    scale2 = jax.random.normal(key3, (200,), dtype=jnp.float32)
    out2 = jax.block_until_ready(rmsnorm(x2, scale2, eps=1e-5))
    ref2 = rmsnorm_ref(x2, scale2, eps=1e-5)
    assert out2.shape == x2.shape
    assert jnp.allclose(out2, ref2, atol=1e-4, rtol=1e-4), "mismatch vs reference (ragged case)"

    print("KERNEL_OK")
</pallas_src>

<mosaic_0001>
module attributes {stable_mosaic.version = 11 : i64} {
  func.func @_rmsnorm_kernel(%arg0: i32, %arg1: memref<16x32xf32, #tpu.memory_space<vmem>>, %arg2: memref<1x32xf32, #tpu.memory_space<vmem>>, %arg3: memref<16x32xf32, #tpu.memory_space<vmem>>) attributes {dimension_semantics = [#tpu.dimension_semantics<parallel>], iteration_bounds = array<i64: 1>, scalar_prefetch = 0 : i64, scratch_operands = 0 : i64, tpu.core_type = #tpu.core_type<tc>, window_params = [{transform_indices = @transform_0, window_bounds = array<i64: 16, 32>}, {pipeline_mode = #tpu.pipeline_mode<synchronous>, transform_indices = @transform_1, window_bounds = array<i64: 1, 32>}, {transform_indices = @transform_2, window_bounds = array<i64: 16, 32>}]} {
    %c0 = arith.constant 0 : index
    %c0_0 = arith.constant 0 : index
    %0 = vector.load %arg1[%c0, %c0_0] : memref<16x32xf32, #tpu.memory_space<vmem>>, vector<16x32xf32>
    %1 = arith.mulf %0, %0 : vector<16x32xf32>
    %cst = arith.constant dense<0.000000e+00> : vector<16xf32>
    %2 = vector.multi_reduction <add>, %1, %cst [1] : vector<16x32xf32> to vector<16xf32>
    %3 = vector.shape_cast %2 : vector<16xf32> to vector<16x1xf32>
    %4 = math.sqrt %3 : vector<16x1xf32>
    %cst_1 = arith.constant 3.200000e+01 : f32
    %5 = math.rsqrt %cst_1 : f32
    %6 = vector.broadcast %5 : f32 to vector<16x1xf32>
    %7 = arith.mulf %4, %6 : vector<16x1xf32>
    %cst_2 = arith.constant 9.99999974E-6 : f32
    %8 = vector.broadcast %cst_2 : f32 to vector<16x1xf32>
    %9 = arith.addf %7, %8 : vector<16x1xf32>
    %cst_3 = arith.constant 1.000000e+00 : f32
    %10 = vector.broadcast %cst_3 : f32 to vector<16x1xf32>
    %11 = arith.divf %10, %9 : vector<16x1xf32>
    %12 = vector.broadcast %11 : vector<16x1xf32> to vector<16x32xf32>
    %13 = arith.mulf %0, %12 : vector<16x32xf32>
    %c0_4 = arith.constant 0 : index
    %c0_5 = arith.constant 0 : index
    %14 = vector.load %arg2[%c0_4, %c0_5] : memref<1x32xf32, #tpu.memory_space<vmem>>, vector<1x32xf32>
    %15 = vector.broadcast %14 : vector<1x32xf32> to vector<16x32xf32>
    %16 = arith.mulf %13, %15 : vector<16x32xf32>
    %c0_6 = arith.constant 0 : index
    %c0_7 = arith.constant 0 : index
    %17 = vector.load %arg3[%c0_6, %c0_7] : memref<16x32xf32, #tpu.memory_space<vmem>>, vector<16x32xf32>
    tpu.vector_store %arg3[%c0_6, %c0_7], %16 {strides = array<i32>} : memref<16x32xf32, #tpu.memory_space<vmem>>, vector<16x32xf32>,
    return
  }
  func.func @transform_0(%arg0: i32) -> (i32, i32) {
    %c0_i32 = arith.constant 0 : i32
    %c0_i32_0 = arith.constant 0 : i32
    return %arg0, %c0_i32 : i32, i32
  }
  func.func @transform_1(%arg0: i32) -> (i32, i32) {
    %c0_i32 = arith.constant 0 : i32
    %c0_i32_0 = arith.constant 0 : i32
    %c0_i32_1 = arith.constant 0 : i32
    return %c0_i32, %c0_i32_0 : i32, i32
  }
  func.func @transform_2(%arg0: i32) -> (i32, i32) {
    %c0_i32 = arith.constant 0 : i32
    %c0_i32_0 = arith.constant 0 : i32
    return %arg0, %c0_i32 : i32, i32
  }
}

</mosaic_0001>

<llo_original>
// kernel: tpu_custom_call.1
$region0: #{tpu_custom_call.1}
  #allocation0 [shape = 'u32[]', space=smem, size = 0x4, offset = 0x4, fixed_abs, tag = 'smem constant byte address 0x4 - core index']
  #allocation1 [shape = 'u32[72,128]{1,0:T(1,128)}', space=vmem, size = 0x9000, scoped, tag = 'internal scratch']
  %s0 = inlined_call_operand.hbm [shape: f32[16,32], index: 0, kind: input, shape index: {}]
  %s1 = inlined_call_operand.hbm [shape: f32[1,32], index: 1, kind: input, shape index: {}]
  %s2 = inlined_call_operand.hbm [shape: f32[16,32], index: 2, kind: output, shape index: {}]
  %s3 = sld [smem:[#allocation0]]
  $region26: #{tpu_custom_call.1} parent=0
    _
  %s5 = ssub.s32 1, %s3
  %s6 = scalar_select 0, %s5, %s3
  $region1: #{tpu_custom_call.1} parent=0
    #allocation2 [shape = 'u8[8192]{0}', space=vmem, size = 0x2000, scoped, tag = 'input window, operand 0, single buffered']
    #allocation3 [shape = 's32[1]{0}', space=sflag, size = 0x4, scoped, tag = 'scoped memory for tpu_custom_call.1']
    #allocation4 [shape = 's32[1]{0}', space=sflag, size = 0x4, scoped, tag = 'scoped memory for tpu_custom_call.1']
    #allocation5 [shape = 'u8[512]{0}', space=vmem, size = 0x400, scoped, tag = 'input window, operand 1, single buffered']
    #allocation6 [shape = 's32[1]{0}', space=sflag, size = 0x4, scoped, tag = 'scoped memory for tpu_custom_call.1']
    #allocation7 [shape = 'u8[8192]{0}', space=vmem, size = 0x2000, scoped, tag = 'output window, operand 0, single buffered']
    %7 = vsyncpa [#allocation3], 0
    %8 = vsyncpa [#allocation6], 0
    %9 = vsyncpa [#allocation4], 0
    // Predicated region
    $region2: #{tpu_custom_call.1} parent=1 // pred_check
      _
    $region3: #{tpu_custom_call.1} parent=1 // pred_check_branch
      %11 = sbr.rel (0) target = $region5
    $region4: #{tpu_custom_call.1} parent=1 // pred_region
      %13 = vsyncadd [#allocation3], 0
      %s14 = sshll.u32 %s0, 4
      %s15 = int_to_ptr.hbm [resolvable:$true] %s14
      %s16 = sshll.u32 [#allocation2], 4
      %s17 = int_to_ptr.vmem [resolvable:$true] %s16
      %22 = dma.hbm_to_vmem [thread:$0]  %s15, 256, %s17, [#allocation3], 128, 128, 8
    $region5: #{tpu_custom_call.1} parent=1 // pred_fallthru
      _
    // Predicated region
    $region6: #{tpu_custom_call.1} parent=1 // pred_check
      _
    $region7: #{tpu_custom_call.1} parent=1 // pred_check_branch
      %24 = sbr.rel (0) target = $region9
    $region8: #{tpu_custom_call.1} parent=1 // pred_region
      %26 = vsyncadd [#allocation6], 0
      %s28 = sshll.u32 %s1, 4
      %s29 = int_to_ptr.hbm [resolvable:$true] %s28
      %s30 = sshll.u32 [#allocation5], 4
      %s31 = int_to_ptr.vmem [resolvable:$true] %s30
      %33 = dma.hbm_to_vmem [thread:$0]  %s29, 16, %s31, [#allocation6]
    $region9: #{tpu_custom_call.1} parent=1 // pred_fallthru
      _
    // Predicated region
    $region10: #{tpu_custom_call.1} parent=1 // pred_check
      _
    $region11: #{tpu_custom_call.1} parent=1 // pred_check_branch
      %35 = sbr.rel (0) target = $region13
    $region12: #{tpu_custom_call.1} parent=1 // pred_region
      %37 = dma.done [#allocation3], 256
    $region13: #{tpu_custom_call.1} parent=1 // pred_fallthru
      _
    // Predicated region
    $region14: #{tpu_custom_call.1} parent=1 // pred_check
      _
    $region15: #{tpu_custom_call.1} parent=1 // pred_check_branch
      %39 = sbr.rel (0) target = $region17
    $region16: #{tpu_custom_call.1} parent=1 // pred_region
      %41 = dma.done [#allocation6], 16
    $region17: #{tpu_custom_call.1} parent=1 // pred_fallthru
      _
    %v42 = vld [vmem:[#allocation2] sm:$0xff]
    %v43 = vld [vmem:[#allocation2 + $0x8] sm:$0xff]
    %v44 = vmul.f32 %v42, %v42
    %v45 = vmul.f32 %v43, %v43
    %vm46 = vcmask 261120
    %v47 = vsel %vm46, %v44, 0.0
    %48 = vadd.xlane.f32.xlu0 %v47
    %v49 = vpop.xlane.xlu0 %48
    %v50 = vsel %vm46, %v45, 0.0
    %51 = vadd.xlane.f32.xlu0 %v50
    %v52 = vpop.xlane.xlu0 %51
    %v53 = vrsqrt.pop %v49
    %v54 = vmul.f32 %v53, %v49
    %v55 = vmul.f32 %v54, %v53
    %v56 = vmul.f32 0.5, %v55
    %v57 = vsub.f32 1.5, %v56
    %v58 = vmul.f32 %v53, %v57
    %v59 = vmul.f32 %v49, %v58
    %vm60 = vcmp.eq.f32.partialorder %v49, inf
    %v61 = vsel %vm60, %v49, %v59
    %vm62 = vcmp.eq.f32.partialorder %v49, 0.0
    %v63 = vand.u32 %v49, 2147483648
    %v64 = vsel %vm62, %v63, %v61
    %v65 = vrsqrt.pop %v52
    %v66 = vmul.f32 %v65, %v52
    %v67 = vmul.f32 %v66, %v65
    %v68 = vmul.f32 0.5, %v67
    %v69 = vsub.f32 1.5, %v68
    %v70 = vmul.f32 %v65, %v69
    %v71 = vmul.f32 %v52, %v70
    %vm72 = vcmp.eq.f32.partialorder %v52, inf
    %v73 = vsel %vm72, %v52, %v71
    %vm74 = vcmp.eq.f32.partialorder %v52, 0.0
    %v75 = vand.u32 %v52, 2147483648
    %v76 = vsel %vm74, %v75, %v73
    %v77 = vmul.f32 %v64, 0.17677669
    %v78 = vmul.f32 %v76, 0.17677669
    %v79 = vadd.f32 %v77, 1e-05
    %v80 = vadd.f32 %v78, 1e-05
    %v81 = vrcp.pop %v79
    %v82 = vmul.f32 %v79, %v81
    %v83 = vsub.f32 1.0, %v82
    %v84 = vmul.f32 %v81, %v83
    %v85 = vadd.f32 %v81, %v84
    %vm86 = vweird.f32 %v79
    %vm87 = vweird.f32 %v81
    %vm88 = vmor %vm86, %vm87
    %v89 = vsel %vm88, %v81, %v85
    %v90 = vand.u32 2147483647, %v79
    %vm91 = vcmp.eq.f32.partialorder %v90, 8.507059e+37
    %v92 = vand.u32 %v79, 2147483648
    %v93 = vor.u32 1.1754944e-38, %v92
    %v94 = vsel %vm91, %v93, %v89
    %v95 = vmul.f32 1.0, %v94
    %v96 = vrcp.pop %v80
    %v97 = vmul.f32 %v80, %v96
    %v98 = vsub.f32 1.0, %v97
    %v99 = vmul.f32 %v96, %v98
    %v100 = vadd.f32 %v96, %v99
    %vm101 = vweird.f32 %v80
    %vm102 = vweird.f32 %v96
    %vm103 = vmor %vm101, %vm102
    %v104 = vsel %vm103, %v96, %v100
    %v105 = vand.u32 2147483647, %v80
    %vm106 = vcmp.eq.f32.partialorder %v105, 8.507059e+37
    %v107 = vand.u32 %v80, 2147483648
    %v108 = vor.u32 1.1754944e-38, %v107
    %v109 = vsel %vm106, %v108, %v104
    %v110 = vmul.f32 1.0, %v109
    %v111 = vmul.f32 %v42, %v95
    %v112 = vmul.f32 %v43, %v110
    %v113 = vld [vmem:[#allocation5] sm:$0x1]
    %v115 = vperm.slane %v113, 0
    %v117 = vmul.f32 %v111, %v115
    %v118 = vmul.f32 %v112, %v115
    %119 = vst.msk [vmem:[#allocation7] sm:$0xff] %vm46, %v117
    %120 = vst.msk [vmem:[#allocation7 + $0x8] sm:$0xff] %vm46, %v118
    // Predicated region
    $region18: #{tpu_custom_call.1} parent=1 // pred_check
      _
    $region19: #{tpu_custom_call.1} parent=1 // pred_check_branch
      %122 = sbr.rel (0) target = $region21
    $region20: #{tpu_custom_call.1} parent=1 // pred_region
      %124 = vsyncadd [#allocation4], 0
      %s125 = sshll.u32 [#allocation7], 4
      %s126 = int_to_ptr.vmem [resolvable:$true] %s125
      %s127 = sshll.u32 %s2, 4
      %s128 = int_to_ptr.hbm [resolvable:$true] %s127
      %133 = dma.vmem_to_hbm [thread:$0]  %s126, 256, %s128, [#allocation4], 128, 128, 8
    $region21: #{tpu_custom_call.1} parent=1 // pred_fallthru
      _
    // Predicated region
    $region22: #{tpu_custom_call.1} parent=1 // pred_check
      _
    $region23: #{tpu_custom_call.1} parent=1 // pred_check_branch
      %135 = sbr.rel (0) target = $region25
    $region24: #{tpu_custom_call.1} parent=1 // pred_region
      %137 = dma.done [#allocation4], 256
    $region25: #{tpu_custom_call.1} parent=1 // pred_fallthru
      _
    %138 = vsyncpa [#allocation3], 1
    %139 = vsyncpa [#allocation6], 1
    %140 = vsyncpa [#allocation4], 1

</llo_original>
